<compile_context>
chip_gen: v5e
topology: v5e:2x2
jax: 0.10.0
libtpu: 0.0.40
codegen_flags: <defaults>
</compile_context>

<pallas_src>
import functools

import jax
import jax.numpy as jnp
from jax.experimental import pallas as pl
from jax.experimental.pallas import tpu as pltpu


def _round_up(x: int, m: int) -> int:
    return ((x + m - 1) // m) * m


def _vmem_limit(*buffer_bytes: int) -> int:
    # double-buffered pipeline blocks + headroom, clamped to a range that is
    # safe on v5e/v6e (128 MiB physical) and v7x (64 MiB physical).
    est = 2 * sum(buffer_bytes) + (4 << 20)
    return int(min(max(est, 16 << 20), 48 << 20))


def _xxt_w_kernel(gamma_ref, x_ref, w_ref, a_ref, acc_ref, *, compute_dtype):
    """Pass 1: accumulate xxT over N tiles; finalize A = gamma * (xxT @ W).

    gamma_ref: SMEM (1,) f32
    x_ref:     VMEM (C, tile_n)  one batch element, one spatial tile
    w_ref:     VMEM (C, C)       spectral-normalized ks=1 conv weight
    a_ref:     VMEM (C, C)       output, written on the last N tile
    acc_ref:   VMEM (C, C) f32   scratch accumulator
    """
    k = pl.program_id(1)

    @pl.when(k == 0)
    def _():
        acc_ref[...] = jnp.zeros_like(acc_ref)

    xc = x_ref[...].astype(compute_dtype)
    # xxT += x_tile @ x_tile^T : contract the lane (spatial) axis of both
    # operands directly -- no explicit transpose is materialized.
    acc_ref[...] += jax.lax.dot_general(
        xc, xc, (((1,), (1,)), ((), ())),
        preferred_element_type=jnp.float32)

    @pl.when(k == pl.num_programs(1) - 1)
    def _():
        gamma = gamma_ref[0]  # hoisted scalar read, once per batch
        a = jnp.dot(acc_ref[...].astype(compute_dtype),
                    w_ref[...].astype(compute_dtype),
                    preferred_element_type=jnp.float32)
        a_ref[...] = (gamma * a).astype(a_ref.dtype)


def _apply_kernel(a_ref, x_ref, o_ref, *, compute_dtype, use_tanh):
    """Pass 2: o_tile = A @ x_tile + x_tile (optionally tanh).

    a_ref: VMEM (C, C) f32   A = gamma * (xxT @ W) for this batch element
    x_ref: VMEM (C, tile_n)
    o_ref: VMEM (C, tile_n)
    """
    x = x_ref[...]
    o = jnp.dot(a_ref[...].astype(compute_dtype), x.astype(compute_dtype),
                preferred_element_type=jnp.float32)
    o = o + x.astype(jnp.float32)
    if use_tanh:
        o = jnp.tanh(o)
    o_ref[...] = o.astype(o_ref.dtype)


def simple_self_attention(x_nchw, conv_weight, gamma, *, sym=False, tanh=False,
                          compute_dtype=jnp.bfloat16, tile_n=None):
    """Pallas implementation of SimpleSelfAttention.forward (ks=1, y=None).

    x_nchw:      (B, C, H, W) float32
    conv_weight: (C, C, 1)    float32  -- already spectral-normalized
    gamma:       (1,)         float32
    """
    B, C, H, W = x_nchw.shape
    N = H * W

    w2d = jnp.asarray(conv_weight, jnp.float32).reshape(C, C)
    if sym:
        w2d = (w2d + w2d.T) / 2.0
    # TODO(synk): ks > 1 (true 1-D convolution with padding ks//2) not
    # implemented; the module default ks=1 pointwise conv is a matmul.

    gamma = jnp.asarray(gamma, jnp.float32).reshape(1)
    x_flat = jnp.asarray(x_nchw, jnp.float32).reshape(B, C, N)

    # Lane-dense spatial tiling: tile_n is a multiple of 128 (unmasked stores),
    # capped so VMEM stays bounded independent of H*W (v7x has 64 MiB VMEM).
    if tile_n is None:
        tile_n = min(_round_up(N, 128), 1024)
    tile_n = _round_up(tile_n, 128)
    n_pad = _round_up(N, tile_n)
    if n_pad != N:
        x_flat = jnp.pad(x_flat, ((0, 0), (0, 0), (0, n_pad - N)))
    nk = n_pad // tile_n

    itemsize = jnp.dtype(jnp.float32).itemsize
    vmem1 = _vmem_limit(C * tile_n * itemsize, 2 * C * C * itemsize)
    vmem2 = _vmem_limit(2 * C * tile_n * itemsize, C * C * itemsize)

    # ---- Pass 1: A_b = gamma * ((x_b x_b^T) @ W) ----------------------------
    a = pl.pallas_call(
        functools.partial(_xxt_w_kernel, compute_dtype=compute_dtype),
        out_shape=jax.ShapeDtypeStruct((B, C, C), jnp.float32),
        grid=(B, nk),
        in_specs=[
            pl.BlockSpec(memory_space=pltpu.MemorySpace.SMEM),                  # gamma
            pl.BlockSpec((pl.Squeezed(), C, tile_n), lambda b, k: (b, 0, k)),   # x
            pl.BlockSpec((C, C), lambda b, k: (0, 0)),                          # W
        ],
        out_specs=pl.BlockSpec((pl.Squeezed(), C, C), lambda b, k: (b, 0, 0)),
        scratch_shapes=[pltpu.VMEM((C, C), jnp.float32)],
        compiler_params=pltpu.CompilerParams(
            dimension_semantics=("parallel", "arbitrary"),
            vmem_limit_bytes=vmem1),
    )(gamma, x_flat, w2d)

    # ---- Pass 2: o = A @ x + x (both grid axes parallel) ---------------------
    out = pl.pallas_call(
        functools.partial(_apply_kernel, compute_dtype=compute_dtype,
                          use_tanh=tanh),
        out_shape=jax.ShapeDtypeStruct((B, C, n_pad), jnp.float32),
        grid=(B, nk),
        in_specs=[
            pl.BlockSpec((pl.Squeezed(), C, C), lambda b, j: (b, 0, 0)),        # A
            pl.BlockSpec((pl.Squeezed(), C, tile_n), lambda b, j: (b, 0, j)),   # x
        ],
        out_specs=pl.BlockSpec((pl.Squeezed(), C, tile_n),
                               lambda b, j: (b, 0, j)),
        compiler_params=pltpu.CompilerParams(
            dimension_semantics=("parallel", "parallel"),
            vmem_limit_bytes=vmem2),
    )(a, x_flat)

    if n_pad != N:
        out = out[:, :, :N]
    return out.reshape(B, C, H, W).astype(x_nchw.dtype)


# ----------------------------- references -----------------------------------


def _reference(x_nchw, conv_weight, gamma, *, sym=False, tanh=False):
    """Pure-JAX f32 reference mirroring the PyTorch forward exactly."""
    B, C, H, W = x_nchw.shape
    hp = jax.lax.Precision.HIGHEST
    w2d = jnp.asarray(conv_weight, jnp.float32).reshape(C, C)
    if sym:
        w2d = (w2d + w2d.T) / 2.0
    x = jnp.asarray(x_nchw, jnp.float32).reshape(B, C, H * W)
    convx = jnp.einsum('oc,bcn->bon', w2d, x, precision=hp)
    xxT = jnp.einsum('bcn,bdn->bcd', x, x, precision=hp)
    o = jnp.einsum('bcd,bdn->bcn', xxT, convx, precision=hp)
    o = jnp.asarray(gamma, jnp.float32).reshape(()) * o + x
    if tanh:
        o = jnp.tanh(o)
    return o.reshape(B, C, H, W)


def _reference_mirrored(x_nchw, conv_weight, gamma, *, sym=False, tanh=False,
                        compute_dtype=jnp.bfloat16):
    """Reference that mirrors the kernel's rounding (compute_dtype operands,
    f32 accumulation, reassociated matmuls) so it can be compared tightly."""
    B, C, H, W = x_nchw.shape
    hp = jax.lax.Precision.HIGHEST
    w2d = jnp.asarray(conv_weight, jnp.float32).reshape(C, C)
    if sym:
        w2d = (w2d + w2d.T) / 2.0
    x = jnp.asarray(x_nchw, jnp.float32).reshape(B, C, H * W)

    def rnd(v):
        return v.astype(compute_dtype).astype(jnp.float32)

    xb = rnd(x)
    xxT = jnp.einsum('bcn,bdn->bcd', xb, xb, precision=hp)
    a = jnp.einsum('bcd,de->bce', rnd(xxT), rnd(w2d), precision=hp)
    a = jnp.asarray(gamma, jnp.float32).reshape(()) * a
    o = jnp.einsum('bce,ben->bcn', rnd(a), xb, precision=hp) + x
    if tanh:
        o = jnp.tanh(o)
    return o.reshape(B, C, H, W)


def _init_params(key, n_in):
    """Matches the module __init__: xavier_normal_ conv1d(ks=1) weight with
    exact spectral normalization, gamma = 0."""
    std = (2.0 / (n_in + n_in)) ** 0.5
    w = std * jax.random.normal(key, (n_in, n_in, 1), dtype=jnp.float32)
    sigma = jnp.linalg.svd(w.reshape(n_in, n_in), compute_uv=False)[0]
    w_sn = w / sigma
    gamma = jnp.zeros((1,), dtype=jnp.float32)
    return w_sn, gamma


def _rel_err(a, b):
    a = jnp.asarray(a, jnp.float32)
    b = jnp.asarray(b, jnp.float32)
    return float(jnp.max(jnp.abs(a - b)) / (jnp.max(jnp.abs(b)) + 1e-6))


if __name__ == "__main__":
    key = jax.random.PRNGKey(0)
    kx, kw = jax.random.split(key)

    B, C, H, W = 2, 4, 16, 16
    x = jax.random.normal(kx, (B, C, H, W), dtype=jnp.float32)
    weight, gamma0 = _init_params(kw, C)

    # 1) Module-faithful run (gamma initialized to 0 -> output == x exactly).
    out0 = jax.block_until_ready(simple_self_attention(x, weight, gamma0))
    ref0 = _reference(x, weight, gamma0)
    assert jnp.allclose(out0, ref0, atol=1e-5), "gamma=0 path mismatch"

    # Nonzero gamma so the attention path is exercised.
    gamma_nz = jnp.full((1,), 0.5, dtype=jnp.float32)

    # 2) Default (bf16 MXU operands, f32 accumulate) vs mirrored reference.
    out_bf = jax.block_until_ready(simple_self_attention(x, weight, gamma_nz))
    ref_mir = _reference_mirrored(x, weight, gamma_nz)
    assert _rel_err(out_bf, ref_mir) < 1e-3, "bf16 kernel vs mirrored ref"

    # 3) Default kernel vs full-f32 reference (bf16 rounding budget).
    ref_f32 = _reference(x, weight, gamma_nz)
    assert _rel_err(out_bf, ref_f32) < 5e-2, "bf16 kernel vs f32 ref"

    # 4) Full-precision compute path.
    out_f32 = jax.block_until_ready(
        simple_self_attention(x, weight, gamma_nz, compute_dtype=jnp.float32))
    assert _rel_err(out_f32, ref_f32) < 5e-2, "f32 kernel vs f32 ref"

    # 5) sym=True, tanh=True path vs mirrored reference.
    out_st = jax.block_until_ready(
        simple_self_attention(x, weight, gamma_nz, sym=True, tanh=True))
    ref_st = _reference_mirrored(x, weight, gamma_nz, sym=True, tanh=True)
    assert _rel_err(out_st, ref_st) < 1e-3, "sym+tanh path mismatch"

    print("KERNEL_OK")
</pallas_src>

<mosaic_0001>
module attributes {stable_mosaic.version = 11 : i64} {
  func.func @_xxt_w_kernel(%arg0: i32, %arg1: i32, %arg2: memref<1xf32, #tpu.memory_space<smem>>, %arg3: memref<1x4x256xf32, #tpu.memory_space<vmem>>, %arg4: memref<4x4xf32, #tpu.memory_space<vmem>>, %arg5: memref<1x4x4xf32, #tpu.memory_space<vmem>>, %arg6: memref<4x4xf32, #tpu.memory_space<vmem>>) attributes {dimension_semantics = [#tpu.dimension_semantics<parallel>, #tpu.dimension_semantics<arbitrary>], iteration_bounds = array<i64: 2, 1>, scalar_prefetch = 0 : i64, scratch_operands = 1 : i64, tpu.core_type = #tpu.core_type<tc>, window_params = [{transform_indices = @transform_0, window_bounds = array<i64: 1>}, {transform_indices = @transform_1, window_bounds = array<i64: 1, 4, 256>}, {pipeline_mode = #tpu.pipeline_mode<synchronous>, transform_indices = @transform_2, window_bounds = array<i64: 4, 4>}, {transform_indices = @transform_3, window_bounds = array<i64: 1, 4, 4>}]} {
    %c0_i32 = arith.constant 0 : i32
    %0 = arith.cmpi eq, %arg1, %c0_i32 : i32
    %1 = arith.extui %0 : i1 to i32
    %c0_i32_0 = arith.constant 0 : i32
    %2 = arith.cmpi ne, %1, %c0_i32_0 : i32
    scf.if %2 {
      %cst_9 = arith.constant 0.000000e+00 : f32
      %13 = vector.broadcast %cst_9 : f32 to vector<4x4xf32>
      %c0_10 = arith.constant 0 : index
      %c0_11 = arith.constant 0 : index
      %14 = vector.load %arg6[%c0_10, %c0_11] : memref<4x4xf32, #tpu.memory_space<vmem>>, vector<4x4xf32>
      tpu.vector_store %arg6[%c0_10, %c0_11], %13 {strides = array<i32>} : memref<4x4xf32, #tpu.memory_space<vmem>>, vector<4x4xf32>,
    } else {
    }
    %c0 = arith.constant 0 : index
    %c0_1 = arith.constant 0 : index
    %c0_2 = arith.constant 0 : index
    %3 = vector.load %arg3[%c0, %c0_1, %c0_2] : memref<1x4x256xf32, #tpu.memory_space<vmem>>, vector<1x4x256xf32>
    %4 = vector.shape_cast %3 : vector<1x4x256xf32> to vector<4x256xf32>
    %5 = arith.truncf %4 : vector<4x256xf32> to vector<4x256xbf16>
    %c0_3 = arith.constant 0 : index
    %c0_4 = arith.constant 0 : index
    %6 = vector.load %arg6[%c0_3, %c0_4] : memref<4x4xf32, #tpu.memory_space<vmem>>, vector<4x4xf32>
    %cst = arith.constant dense<0.000000e+00> : vector<4x4xf32>
    %7 = tpu.matmul %5, %5, %cst {dimension_numbers = #tpu.dot_dimension_numbers<[1], [1], [0], [0], [0, 0, 1, 0], [], []>} : vector<4x256xbf16>, vector<4x256xbf16>, vector<4x4xf32> -> vector<4x4xf32>
    %8 = arith.addf %6, %7 : vector<4x4xf32>
    %c0_5 = arith.constant 0 : index
    %c0_6 = arith.constant 0 : index
    %9 = vector.load %arg6[%c0_5, %c0_6] : memref<4x4xf32, #tpu.memory_space<vmem>>, vector<4x4xf32>
    tpu.vector_store %arg6[%c0_5, %c0_6], %8 {strides = array<i32>} : memref<4x4xf32, #tpu.memory_space<vmem>>, vector<4x4xf32>,
    %c0_i32_7 = arith.constant 0 : i32
    %10 = arith.cmpi eq, %arg1, %c0_i32_7 : i32
    %11 = arith.extui %10 : i1 to i32
    %c0_i32_8 = arith.constant 0 : i32
    %12 = arith.cmpi ne, %11, %c0_i32_8 : i32
    scf.if %12 {
      %c0_9 = arith.constant 0 : index
      %13 = memref.load %arg2[%c0_9] : memref<1xf32, #tpu.memory_space<smem>>
      %c0_10 = arith.constant 0 : index
      %c0_11 = arith.constant 0 : index
      %14 = vector.load %arg6[%c0_10, %c0_11] : memref<4x4xf32, #tpu.memory_space<vmem>>, vector<4x4xf32>
      %15 = arith.truncf %14 : vector<4x4xf32> to vector<4x4xbf16>
      %c0_12 = arith.constant 0 : index
      %c0_13 = arith.constant 0 : index
      %16 = vector.load %arg4[%c0_12, %c0_13] : memref<4x4xf32, #tpu.memory_space<vmem>>, vector<4x4xf32>
      %17 = arith.truncf %16 : vector<4x4xf32> to vector<4x4xbf16>
      %cst_14 = arith.constant dense<0.000000e+00> : vector<4x4xf32>
      %18 = tpu.matmul %15, %17, %cst_14 {dimension_numbers = #tpu.dot_dimension_numbers<[1], [0], [0], [1], [0, 0, 1, 1], [], []>} : vector<4x4xbf16>, vector<4x4xbf16>, vector<4x4xf32> -> vector<4x4xf32>
      %19 = vector.broadcast %13 : f32 to vector<4x4xf32>
      %20 = arith.mulf %19, %18 : vector<4x4xf32>
      %c0_15 = arith.constant 0 : index
      %c0_16 = arith.constant 0 : index
      %c0_17 = arith.constant 0 : index
      %21 = vector.load %arg5[%c0_15, %c0_16, %c0_17] : memref<1x4x4xf32, #tpu.memory_space<vmem>>, vector<1x4x4xf32>
      %22 = vector.shape_cast %21 : vector<1x4x4xf32> to vector<4x4xf32>
      %23 = vector.shape_cast %20 : vector<4x4xf32> to vector<1x4x4xf32>
      tpu.vector_store %arg5[%c0_15, %c0_16, %c0_17], %23 {strides = array<i32>} : memref<1x4x4xf32, #tpu.memory_space<vmem>>, vector<1x4x4xf32>,
    } else {
    }
    return
  }
  func.func @transform_0(%arg0: i32, %arg1: i32) -> i32 {
    %c0_i32 = arith.constant 0 : i32
    %c0_i32_0 = arith.constant 0 : i32
    return %c0_i32 : i32
  }
  func.func @transform_1(%arg0: i32, %arg1: i32) -> (i32, i32, i32) {
    %c0_i32 = arith.constant 0 : i32
    %c0_i32_0 = arith.constant 0 : i32
    return %arg0, %c0_i32, %arg1 : i32, i32, i32
  }
  func.func @transform_2(%arg0: i32, %arg1: i32) -> (i32, i32) {
    %c0_i32 = arith.constant 0 : i32
    %c0_i32_0 = arith.constant 0 : i32
    %c0_i32_1 = arith.constant 0 : i32
    return %c0_i32, %c0_i32_0 : i32, i32
  }
  func.func @transform_3(%arg0: i32, %arg1: i32) -> (i32, i32, i32) {
    %c0_i32 = arith.constant 0 : i32
    %c0_i32_0 = arith.constant 0 : i32
    %c0_i32_1 = arith.constant 0 : i32
    return %arg0, %c0_i32, %c0_i32_0 : i32, i32, i32
  }
}

</mosaic_0001>

<llo_original>
// kernel: tpu_custom_call.1
$region0: #{tpu_custom_call.1}
  #allocation0 [shape = 'u32[]', space=smem, size = 0x4, offset = 0x4, fixed_abs, tag = 'smem constant byte address 0x4 - core index']
  #allocation1 [shape = 'u32[72,128]{1,0:T(1,128)}', space=vmem, size = 0x9000, scoped, tag = 'internal scratch']
  #allocation2 [shape = 'f32[4,4]{1,0:T(4,128)}', space=vmem, size = 0x800, scoped, tag = 'scratch operand']
  #allocation3 [shape = 'f32[1]{0:T(128)S(6)}', space=smem, size = 0x200, scoped, tag = 'scoped memory for tpu_custom_call.1']
  %s0 = inlined_call_operand.<no memory space> [shape: f32[1], index: 0, kind: input, shape index: {}]
  %s1 = inlined_call_operand.hbm [shape: f32[2,4,256], index: 1, kind: input, shape index: {}]
  %s2 = inlined_call_operand.hbm [shape: f32[4,4], index: 2, kind: input, shape index: {}]
  %s3 = inlined_call_operand.hbm [shape: f32[2,4,4], index: 3, kind: output, shape index: {}]
  %s4 = sld [smem:[#allocation0]]
  $region61: #{tpu_custom_call.1} parent=0
    _
  %s6 = ssub.s32 1, %s4
  %s7 = scalar_select 0, %s6, %s4
  %8 = sst [smem:[#allocation3]] %s0
  $region1: #{tpu_custom_call.1} parent=0
    #allocation4 [shape = 'u8[8192]{0}', space=vmem, size = 0x2000, scoped, tag = 'input window, operand 1']
    #allocation5 [shape = 's32[2]{0}', space=sflag, size = 0x8, scoped, tag = 'scoped memory for tpu_custom_call.1']
    #allocation6 [shape = 's32[2]{0}', space=sflag, size = 0x8, scoped, tag = 'scoped memory for tpu_custom_call.1']
    #allocation7 [shape = 'u8[2048]{0}', space=vmem, size = 0x800, scoped, tag = 'input window, operand 2, single buffered']
    #allocation8 [shape = 's32[1]{0}', space=sflag, size = 0x4, scoped, tag = 'scoped memory for tpu_custom_call.1']
    #allocation9 [shape = 'u8[4096]{0}', space=vmem, size = 0x1000, scoped, tag = 'output window, operand 0']
    %9 = vsyncpa [#allocation5], 0
    %s10 = scalar_lea.sflag [#allocation5], 1
    %11 = vsyncpa %s10, 0
    %12 = vsyncpa [#allocation8], 0
    %13 = vsyncpa [#allocation6], 0
    %s14 = scalar_lea.sflag [#allocation6], 1
    %15 = vsyncpa %s14, 0
    loop: start=0, step=1, limit=4
    $region2: #{tpu_custom_call.1} parent=1 // loop_pre_header
      _
    $region3: #{tpu_custom_call.1} parent=1 // loop_header
      %s17 = sphi 0, %s21
      %p18 = scmp.ge.s32.totalorder %s17, 4
      %s24 = sphi 0, %s36
      %s25 = sphi 0, %s32
      %s26 = sphi 0, %s24
      %s27 = sphi 0, %s25
      %s28 = sphi 0, %s26
      %s29 = sphi 0, %s27
      %s37 = sphi 0, %s37
      %s39 = sphi 0, %s37
      %s40 = sphi 0, %s39
      %s54 = sphi 0, %s40
      %s62 = sphi 0, %s64
      %s65 = sphi 0, %s62
      %s66 = sphi 0, %s65
      %s82 = sphi 0, %s66
      %s86 = sphi 0, %s86
      %s88 = sphi 0, %s86
      %s89 = sphi 0, %s88
      %s103 = sphi 0, %s89
      %s109 = sphi 0, %s111
      %s112 = sphi 0, %s109
      %s113 = sphi 0, %s112
      %s129 = sphi 0, %s113
    $region4: #{tpu_custom_call.1} parent=1 // loop_header_branch
      %20 = sbr.rel (%p18) target = $region8
    $region5: #{tpu_custom_call.1} parent=1 // loop_body
      %s22 = ssub.s32 %s17, 1
      %s23 = ssub.s32 %s17, 2
      %s30 = sadd.s32 1, %s25
      %p31 = scmp.ge.s32.totalorder %s30, 1
      %s32 = scalar_select %p31, 0, %s30
      %s33 = sadd.s32 1, %s24
      %s34 = scalar_select %p31, %s33, %s24
      %p35 = scmp.ge.s32.totalorder %s34, 2
      %s36 = scalar_select %p35, 0, %s34
      %s38 = sadd.s32 %s37, 1
      %p41 = scmp.eq.s32.totalorder %s17, 1
      %p42 = scmp.ne.s32.totalorder %s37, %s39
      %p43 = scmp.eq.s32.totalorder %s17, 0
      %p44 = por %p42, %p43
      %p45 = scmp.ne.s32.totalorder %s37, %s39
      %p46 = scmp.eq.s32.totalorder %s22, 1
      %p47 = por %p45, %p46
      %p48 = scmp.ne.s32.totalorder %s39, %s40
      %p49 = scmp.eq.s32.totalorder %s22, 0
      %p50 = por %p48, %p49
      %p51 = scmp.ne.s32.totalorder %s39, %s40
      %p52 = scmp.eq.s32.totalorder %s23, 1
      %p53 = por %p51, %p52
      %p55 = scmp.ne.s32.totalorder %s40, %s54
      %p56 = scmp.eq.s32.totalorder %s23, 0
      %p57 = por %p55, %p56
      %s58 = ssub.s32 %s24, %s36
      %s59 = ssub.s32 %s25, %s32
      %s60 = sor.u32 %s58, %s59
      %p61 = scmp.eq.s32.totalorder %s60, 0
      %s63 = sadd.s32 %s62, 1
      %s64 = scalar_select %p61, %s62, %s63
      %p67 = pneg %p61
      %p68 = scmp.eq.s32.totalorder %s17, 1
      %p69 = por %p67, %p68
      %p70 = scmp.ne.s32.totalorder %s62, %s65
      %p71 = scmp.eq.s32.totalorder %s17, 0
      %p72 = por %p70, %p71
      %p73 = scmp.ne.s32.totalorder %s62, %s65
      %p74 = scmp.eq.s32.totalorder %s22, 1
      %p75 = por %p73, %p74
      %p76 = scmp.ne.s32.totalorder %s65, %s66
      %p77 = scmp.eq.s32.totalorder %s22, 0
      %p78 = por %p76, %p77
      %p79 = scmp.ne.s32.totalorder %s65, %s66
      %p80 = scmp.eq.s32.totalorder %s23, 1
      %p81 = por %p79, %p80
      %p83 = scmp.ne.s32.totalorder %s66, %s82
      %p84 = scmp.eq.s32.totalorder %s23, 0
      %p85 = por %p83, %p84
      %s87 = sadd.s32 %s86, 1
      %p90 = scmp.eq.s32.totalorder %s17, 1
      %p91 = scmp.ne.s32.totalorder %s86, %s88
      %p92 = scmp.eq.s32.totalorder %s17, 0
      %p93 = por %p91, %p92
      %p94 = scmp.ne.s32.totalorder %s86, %s88
      %p95 = scmp.eq.s32.totalorder %s22, 1
      %p96 = por %p94, %p95
      %p97 = scmp.ne.s32.totalorder %s88, %s89
      %p98 = scmp.eq.s32.totalorder %s22, 0
      %p99 = por %p97, %p98
      %p100 = scmp.ne.s32.totalorder %s88, %s89
      %p101 = scmp.eq.s32.totalorder %s23, 1
      %p102 = por %p100, %p101
      %p104 = scmp.ne.s32.totalorder %s89, %s103
      %p105 = scmp.eq.s32.totalorder %s23, 0
      %p106 = por %p104, %p105
      %s107 = ssub.s32 %s24, %s36
      %p108 = scmp.eq.s32.totalorder %s107, 0
      %s110 = sadd.s32 %s109, 1
      %s111 = scalar_select %p108, %s109, %s110
      %p114 = pneg %p108
      %p115 = scmp.eq.s32.totalorder %s17, 1
      %p116 = por %p114, %p115
      %p117 = scmp.ne.s32.totalorder %s109, %s112
      %p118 = scmp.eq.s32.totalorder %s17, 0
      %p119 = por %p117, %p118
      %p120 = scmp.ne.s32.totalorder %s109, %s112
      %p121 = scmp.eq.s32.totalorder %s22, 1
      %p122 = por %p120, %p121
      %p123 = scmp.ne.s32.totalorder %s112, %s113
      %p124 = scmp.eq.s32.totalorder %s22, 0
      %p125 = por %p123, %p124
      %p126 = scmp.ne.s32.totalorder %s112, %s113
      %p127 = scmp.eq.s32.totalorder %s23, 1
      %p128 = por %p126, %p127
      %p130 = scmp.ne.s32.totalorder %s113, %s129
      %p131 = scmp.eq.s32.totalorder %s23, 0
      %p132 = por %p130, %p131
      %p133 = scmp.le.s32.totalorder 1, %s17
      %p134 = scmp.lt.s32.totalorder %s17, 3
      %p135 = pnand %p133, %p134
      %p136 = pneg %p135
      // Predicated region
      $region9: #{tpu_custom_call.1} parent=5 // pred_check
        _
      $region10: #{tpu_custom_call.1} parent=5 // pred_check_branch
        %138 = sbr.rel (%p135) target = $region12
      $region11: #{tpu_custom_call.1} parent=5 // pred_region
        %s139 = ssub.s32 %s17, 1
        // Predicated region
        $region13: #{tpu_custom_call.1} parent=11 // pred_check
          %p140 = pneg %p50
        $region14: #{tpu_custom_call.1} parent=11 // pred_check_branch
          %142 = sbr.rel (%p140) target = $region16
        $region15: #{tpu_custom_call.1} parent=11 // pred_region
          _
        $region16: #{tpu_custom_call.1} parent=11 // pred_fallthru
          _
        // Predicated region
        $region17: #{tpu_custom_call.1} parent=11 // pred_check
          %p143 = pneg %p99
        $region18: #{tpu_custom_call.1} parent=11 // pred_check_branch
          %145 = sbr.rel (%p143) target = $region20
        $region19: #{tpu_custom_call.1} parent=11 // pred_region
          %147 = vsyncadd [#allocation8], 0
          %s149 = sshll.u32 %s2, 4
          %s150 = int_to_ptr.hbm [resolvable:$true] %s149
          %s151 = sshll.u32 [#allocation7], 4
          %s152 = int_to_ptr.vmem [resolvable:$true] %s151
          %154 = dma.hbm_to_vmem [thread:$0]  %s150, 64, %s152, [#allocation8]
        $region20: #{tpu_custom_call.1} parent=11 // pred_fallthru
          _
      $region12: #{tpu_custom_call.1} parent=5 // pred_fallthru
        _
      %p155 = scmp.lt.s32.totalorder %s17, 2
      // Predicated region
      $region21: #{tpu_custom_call.1} parent=5 // pred_check
        %p156 = pneg %p155
      $region22: #{tpu_custom_call.1} parent=5 // pred_check_branch
        %158 = sbr.rel (%p156) target = $region24
      $region23: #{tpu_custom_call.1} parent=5 // pred_region
        // Predicated region
        $region25: #{tpu_custom_call.1} parent=23 // pred_check
          %p159 = pneg %p72
        $region26: #{tpu_custom_call.1} parent=23 // pred_check_branch
          %161 = sbr.rel (%p159) target = $region28
        $region27: #{tpu_custom_call.1} parent=23 // pred_region
          %s162 = sand.u32 %s62, 1
          %s163 = scalar_lea.sflag [#allocation5], %s162
          %s164 = sand.u32 %s62, 1
          %s165 = smul.addr %s164, 8
          %s166 = scalar_lea.vmem [#allocation4], %s165
          %s167 = smul.u32 2, %s25
          %169 = vsyncadd %s163, 0
          %s170 = smul.addr %s24, 2
          %s171 = sadd.s32 %s167, %s170
          %s172 = smul.addr %s171, 4
          %s173 = scalar_lea.hbm %s1, %s172
          %s175 = sshll.u32 %s173, 4
          %s176 = int_to_ptr.hbm [resolvable:$true] %s175
          %s177 = sshll.u32 %s166, 4
          %s178 = int_to_ptr.vmem [resolvable:$true] %s177
          %180 = dma.hbm_to_vmem [thread:$0]  %s176, 128, %s178, %s163
        $region28: #{tpu_custom_call.1} parent=23 // pred_fallthru
          _
      $region24: #{tpu_custom_call.1} parent=5 // pred_fallthru
        _
      %p181 = scmp.le.s32.totalorder 1, %s17
      %p182 = scmp.lt.s32.totalorder %s17, 3
      %p183 = pnand %p181, %p182
      %p184 = pneg %p183
      // Predicated region
      $region29: #{tpu_custom_call.1} parent=5 // pred_check
        _
      $region30: #{tpu_custom_call.1} parent=5 // pred_check_branch
        %186 = sbr.rel (%p183) target = $region32
      $region31: #{tpu_custom_call.1} parent=5 // pred_region
        %s187 = ssub.s32 %s17, 1
        %s188 = sand.u32 %s65, 1
        %s189 = scalar_lea.sflag [#allocation5], %s188
        %s190 = sand.u32 %s65, 1
        %s191 = smul.addr %s190, 8
        %s192 = scalar_lea.vmem [#allocation4], %s191
        // Predicated region
        $region33: #{tpu_custom_call.1} parent=31 // pred_check
          %p193 = pneg %p78
        $region34: #{tpu_custom_call.1} parent=31 // pred_check_branch
          %195 = sbr.rel (%p193) target = $region36
        $region35: #{tpu_custom_call.1} parent=31 // pred_region
          %197 = dma.done %s189, 128
        $region36: #{tpu_custom_call.1} parent=31 // pred_fallthru
          _
        // Predicated region
        $region37: #{tpu_custom_call.1} parent=31 // pred_check
          %p198 = pneg %p99
        $region38: #{tpu_custom_call.1} parent=31 // pred_check_branch
          %200 = sbr.rel (%p198) target = $region40
        $region39: #{tpu_custom_call.1} parent=31 // pred_region
          %202 = dma.done [#allocation8], 64
        $region40: #{tpu_custom_call.1} parent=31 // pred_fallthru
          _
        %p203 = pneg %p50
        %p204 = pneg %p47
        %s205 = sand.u32 %s65, 1
        %s206 = scalar_lea.sflag [#allocation5], %s205
        %s207 = sand.u32 %s65, 1
        %s208 = smul.addr %s207, 8
        %s209 = scalar_lea.vmem [#allocation4], %s208
        %p210 = pneg %p78
        %p211 = pneg %p75
        %p212 = pneg %p99
        %p213 = pneg %p96
        %p214 = pneg %p125
        %p215 = pneg %p122
        %s216 = sand.u32 %s112, 1
        %s217 = scalar_lea.sflag [#allocation6], %s216
        %s218 = sand.u32 %s112, 1
        %s219 = smul.addr %s218, 4
        %s220 = scalar_lea.vmem [#allocation9], %s219
        %s221 = smul.u32 2, %s27
        %p223 = scmp.eq.s32.totalorder %s27, 0
        // Predicated region
        $region41: #{tpu_custom_call.1} parent=31 // pred_check
          %p224 = pneg %p223
        $region42: #{tpu_custom_call.1} parent=31 // pred_check_branch
          %226 = sbr.rel (%p224) target = $region44
        $region43: #{tpu_custom_call.1} parent=31 // pred_region
          %vm227 = vcmask 27648
          %228 = vst.msk [vmem:[#allocation2] sm:$0xf] %vm227, 0.0
        $region44: #{tpu_custom_call.1} parent=31 // pred_fallthru
          _
        %v229 = vld [vmem:[%s192] sm:$0xff]
        %231 = vst [vmem:[#allocation1] ss:$2 sm:$0xff] %v229
        %v232 = vld.sshfl [vmem:[#allocation1] sm:$0xff pattern:$0x75316420]
        %v233 = vld.sshfl [vmem:[#allocation1 + $0x8] sm:$0xff pattern:$0x75316420]
        %v236 = vpack.c.bf16 %v232, %v232
        %v237 = vpack.c.bf16 %v233, %v233
        %v238 = vld [vmem:[#allocation2] sm:$0xf]
        %239 = vmatpush.bf16.xpose.msra.mxu0 0
        %240 = vmatpush.bf16.xpose.msra.mxu0 0
        %241 = vmatpush.bf16.xpose.msra.mxu0 0
        %242 = vmatpush.bf16.xpose.msra.mxu0 0
        %243 = vmatpush.bf16.xpose.msra.mxu0 0
        %244 = vmatpush.bf16.xpose.msra.mxu0 0
        %245 = vmatpush.bf16.xpose.msra.mxu0 0
        %246 = vmatpush.bf16.xpose.msra.mxu0 %v236
        %247 = vmatmul.bf16.gmra.mxu0 %v236
        %v248 = vpop.f32.mrf.mxu0
        %v249 = vadd.f32 0.0, %v248
        %v250 = vpop.f32.mrf.mxu0
        %251 = vdwg.mxu0
        %252 = vmatpush.bf16.xpose.msra.mxu0 0
        %253 = vmatpush.bf16.xpose.msra.mxu0 0
        %254 = vmatpush.bf16.xpose.msra.mxu0 0
        %255 = vmatpush.bf16.xpose.msra.mxu0 0
        %256 = vmatpush.bf16.xpose.msra.mxu0 0
        %257 = vmatpush.bf16.xpose.msra.mxu0 0
        %258 = vmatpush.bf16.xpose.msra.mxu0 0
        %259 = vmatpush.bf16.xpose.msra.mxu0 %v237
        %260 = vmatmul.bf16.gmra.mxu0 %v237
        %v261 = vpop.f32.mrf.mxu0
        %v262 = vadd.f32 %v249, %v261
        %v263 = vpop.f32.mrf.mxu0
        %264 = vdwg.mxu0
        %v265 = vadd.f32 %v238, %v262
        %vm266 = vcmask 27648
        %267 = vst.msk [vmem:[#allocation2] sm:$0xf] %vm266, %v265
        // Predicated region
        $region45: #{tpu_custom_call.1} parent=31 // pred_check
          %p268 = pneg %p223
        $region46: #{tpu_custom_call.1} parent=31 // pred_check_branch
          %270 = sbr.rel (%p268) target = $region48
        $region47: #{tpu_custom_call.1} parent=31 // pred_region
          %s271 = sld [smem:[#allocation3]]
          %v272 = vld [vmem:[#allocation2] sm:$0xf]
          %v273 = vpack.c.bf16 %v272, %v272
          %v274 = vld [vmem:[#allocation7] sm:$0xf]
          %v275 = vpack.c.bf16 %v274, %v274
          %vm276 = vcmask 31744
          %v278 = vsel %vm276, %v273, 0
          %vm280 = vcmask 1041408
          %v282 = vsel %vm280, %v275, 0
          %284 = vmatpush.bf16.msra.mxu0 0
          %285 = vmatpush.bf16.msra.mxu0 0
          %286 = vmatpush.bf16.msra.mxu0 0
          %287 = vmatpush.bf16.msra.mxu0 0
          %288 = vmatpush.bf16.msra.mxu0 0
          %289 = vmatpush.bf16.msra.mxu0 0
          %290 = vmatpush.bf16.msra.mxu0 0
          %291 = vmatpush.bf16.msra.mxu0 %v282
          %292 = vmatmul.bf16.gmra.mxu0 %v278
          %v293 = vpop.f32.mrf.mxu0
          %v294 = vadd.f32 0.0, %v293
          %v295 = vpop.f32.mrf.mxu0
          %296 = vdwg.mxu0
          %v297 = vstv %s271
          %v298 = vmul.f32 %v297, %v294
          %299 = vst.msk [vmem:[%s220] sm:$0xf] %vm266, %v298
        $region48: #{tpu_custom_call.1} parent=31 // pred_fallthru
          _
        %s300 = sand.u32 %s112, 1
        %s301 = scalar_lea.sflag [#allocation6], %s300
        %s302 = sand.u32 %s112, 1
        %s303 = smul.addr %s302, 4
        %s304 = scalar_lea.vmem [#allocation9], %s303
        // Predicated region
        $region49: #{tpu_custom_call.1} parent=31 // pred_check
          %p305 = pneg %p122
        $region50: #{tpu_custom_call.1} parent=31 // pred_check_branch
          %307 = sbr.rel (%p305) target = $region52
        $region51: #{tpu_custom_call.1} parent=31 // pred_region
          %309 = vsyncadd %s301, 0
          %s310 = smul.addr %s26, 4
          %s311 = scalar_lea.hbm %s3, %s310
          %s313 = sshll.u32 %s304, 4
          %s314 = int_to_ptr.vmem [resolvable:$true] %s313
          %s315 = sshll.u32 %s311, 4
          %s316 = int_to_ptr.hbm [resolvable:$true] %s315
          %318 = dma.vmem_to_hbm [thread:$0]  %s314, 64, %s316, %s301
        $region52: #{tpu_custom_call.1} parent=31 // pred_fallthru
          _
      $region32: #{tpu_custom_call.1} parent=5 // pred_fallthru
        _
      %p319 = scmp.le.s32.totalorder 2, %s17
      // Predicated region
      $region53: #{tpu_custom_call.1} parent=5 // pred_check
        %p320 = pneg %p319
      $region54: #{tpu_custom_call.1} parent=5 // pred_check_branch
        %322 = sbr.rel (%p320) target = $region56
      $region55: #{tpu_custom_call.1} parent=5 // pred_region
        %s323 = ssub.s32 %s17, 2
        // Predicated region
        $region57: #{tpu_custom_call.1} parent=55 // pred_check
          %p324 = pneg %p128
        $region58: #{tpu_custom_call.1} parent=55 // pred_check_branch
          %326 = sbr.rel (%p324) target = $region60
        $region59: #{tpu_custom_call.1} parent=55 // pred_region
          %s327 = sand.u32 %s113, 1
          %s328 = scalar_lea.sflag [#allocation6], %s327
          %s329 = sand.u32 %s113, 1
          %s330 = smul.addr %s329, 4
          %s331 = scalar_lea.vmem [#allocation9], %s330
          %333 = dma.done %s328, 64
        $region60: #{tpu_custom_call.1} parent=55 // pred_fallthru
          _
      $region56: #{tpu_custom_call.1} parent=5 // pred_fallthru
        _
    $region6: #{tpu_custom_call.1} parent=1 // loop_footer
      %s21 = sadd.s32 1, %s17
    $region7: #{tpu_custom_call.1} parent=1 // loop_footer_branch
      %16 = sbr.rel target = $region3
    $region8: #{tpu_custom_call.1} parent=1 // loop_exit
      _
    %334 = vsyncpa [#allocation5], 1
    %s335 = scalar_lea.sflag [#allocation5], 1
    %336 = vsyncpa %s335, 1
    %337 = vsyncpa [#allocation8], 1
    %338 = vsyncpa [#allocation6], 1
    %s339 = scalar_lea.sflag [#allocation6], 1
    %340 = vsyncpa %s339, 1

</llo_original>
